<compile_context>
chip_gen: v6e
topology: v6e:2x2x1
jax: 0.10.0
libtpu: 0.0.40
codegen_flags: <defaults>
</compile_context>

<pallas_src>
import functools

import jax
import jax.numpy as jnp
from jax.experimental import pallas as pl
from jax.experimental.pallas import tpu as pltpu

BN_EPS = 1e-5
LEAKY_SLOPE = 0.1


def _round_up(x, m):
    return ((x + m - 1) // m) * m


# --------------------------------------------------------------------------- #
# Kernel
# --------------------------------------------------------------------------- #
def mlp_kernel(x_ref, w1_ref, b1_ref, w2_ref, b2_ref, o_ref, *, bf16_epilogue):
    # Linear1 (BN + bias already folded into w1/b1): [TB, D_in] @ [D_in, H],
    # bf16 operands, f32 accumulation on the MXU.
    h = jnp.dot(x_ref[...], w1_ref[...], preferred_element_type=jnp.float32)

    if bf16_epilogue:
        # v6e/v7x: bf16 VPU packs 2 elems/lane -> half the VALU bundles for the
        # (TB, H) intermediate and no separate cast before the second matmul.
        h = h.astype(jnp.bfloat16) + b1_ref[...]
        h = jnp.maximum(h, h * LEAKY_SLOPE)          # LeakyReLU(0.1)
    else:
        # v5e: no bf16 VPU -> keep the epilogue in f32, cast once for the MXU.
        h = h + b1_ref[...]
        h = jnp.maximum(h, h * LEAKY_SLOPE)
        h = h.astype(w2_ref.dtype)

    # Dropout(p=0.5) in eval mode -> identity.

    # Linear2 (classifier, lane-dense padded): [TB, H] @ [H, C_pad], f32 acc,
    # bf16 store (halves the dominant HBM writeback stream).
    o_ref[...] = (jnp.dot(h, w2_ref[...], preferred_element_type=jnp.float32)
                  + b2_ref[...]).astype(o_ref.dtype)


# --------------------------------------------------------------------------- #
# Wrapper-side helpers
# --------------------------------------------------------------------------- #
def _fold_and_cast(params, C_pad, epilogue_dtype):
    """Fold BN into linear1, pad classifier to C_pad lanes, cast weights to bf16."""
    w1, b1, gamma, beta, mean, var, w2, b2 = params
    H, C = w2.shape

    scale = gamma * jax.lax.rsqrt(var + BN_EPS)                   # [1, H]
    # Fold in f32, cast last (minimizes mantissa loss if running_var is small).
    w1f = (w1.astype(jnp.float32) * scale).astype(jnp.bfloat16)   # [D_in, H]
    b1f = ((b1 - mean) * scale + beta).astype(epilogue_dtype)     # [1, H]

    w2p = jnp.zeros((H, C_pad), jnp.bfloat16).at[:, :C].set(w2.astype(jnp.bfloat16))
    b2p = jnp.zeros((1, C_pad), jnp.float32).at[:, :C].set(b2)
    return w1f, b1f, w2p, b2p


def _hw_config():
    """(vmem_limit_bytes, bf16_epilogue) derived from the local TPU generation."""
    # VMEM budget: leave ~25% headroom for Mosaic internal scratch / pipeline
    # buffers.  v7x (64 MiB physical) -> 48 MiB; v5e/v6e (128 MiB) -> 96 MiB.
    try:
        vmem_cap = int(pltpu.get_tpu_info().vmem_capacity_bytes)
    except Exception:
        vmem_cap = 128 * 1024 * 1024
    vmem_limit = min((vmem_cap * 3) // 4, 96 * 1024 * 1024)

    # bf16 VPU exists on v6e/v7x but not on v5e (and older) -> f32 epilogue there.
    try:
        kind = jax.devices()[0].device_kind.lower()
    except Exception:
        kind = ""
    bf16_epilogue = ("v6" in kind) or ("v7" in kind)
    return vmem_limit, bf16_epilogue


def _choose_block_b(B):
    """Batch tile: multiple of 8 sublanes (ideally 256 MXU-M rows), >=2 grid
    steps once B is moderate (feeds both v7x TCs), preferring a tile that
    divides B so no wrapper-side jnp.pad pass over x is needed."""
    if B <= 256:
        return _round_up(B, 8)            # single step, sublane-aligned
    for cand in (1024, 512, 256):         # exact divisors first (no padding)
        if B % cand == 0 and B // cand >= 2:
            return cand
    return min(_round_up(pl.cdiv(B, 2), 256), 1024)


# --------------------------------------------------------------------------- #
# Forward
# --------------------------------------------------------------------------- #
def mlp_forward(x, params, *, block_b=None):
    B, D_in = x.shape
    w1, b1, gamma, beta, mean, var, w2, b2 = params
    H = w1.shape[1]
    C = w2.shape[1]

    vmem_limit, bf16_epilogue = _hw_config()
    epi_dtype = jnp.bfloat16 if bf16_epilogue else jnp.float32

    # Lane-dense classifier output (multiple of 128 lanes) -> unmasked vst.
    C_pad = _round_up(C, 128)
    w1f, b1f, w2p, b2p = _fold_and_cast(params, C_pad, epi_dtype)

    xb = x.astype(jnp.bfloat16)

    if block_b is None:
        block_b = _choose_block_b(B)
    B_pad = _round_up(B, block_b)
    if B_pad != B:
        # One extra pass over x in HBM; _choose_block_b avoids this whenever a
        # clean divisor of B exists.  TODO(synk): pad once outside the hot path.
        xb = jnp.pad(xb, ((0, B_pad - B), (0, 0)))
    grid = (B_pad // block_b,)

    # Weights/biases are grid-invariant: constant index_map means they are
    # fetched once, so single-buffer them (halves their VMEM footprint).
    resident = lambda shape: pl.BlockSpec(shape, lambda i: (0, 0),
                                          pipeline_mode=pl.Buffered(1))

    bytes_accessed = (xb.size * 2 + w1f.size * 2
                      + b1f.size * b1f.dtype.itemsize
                      + w2p.size * 2 + b2p.size * 4
                      + B_pad * C_pad * 2)
    cost = pl.CostEstimate(
        flops=2 * B_pad * (D_in * H + H * C_pad),
        transcendentals=0,
        bytes_accessed=int(bytes_accessed),
    )

    kernel = functools.partial(mlp_kernel, bf16_epilogue=bf16_epilogue)

    out = pl.pallas_call(
        kernel,
        out_shape=jax.ShapeDtypeStruct((B_pad, C_pad), jnp.bfloat16),
        grid_spec=pltpu.PrefetchScalarGridSpec(
            num_scalar_prefetch=0,
            grid=grid,
            in_specs=[
                pl.BlockSpec((block_b, D_in), lambda i: (i, 0)),  # x (batch-tiled)
                resident((D_in, H)),                              # folded w1 (bf16)
                resident((1, H)),                                 # folded b1
                resident((H, C_pad)),                             # padded w2 (bf16)
                resident((1, C_pad)),                             # padded b2 (f32)
            ],
            out_specs=pl.BlockSpec((block_b, C_pad), lambda i: (i, 0)),
        ),
        compiler_params=pltpu.CompilerParams(
            dimension_semantics=("parallel",),   # shards batch tiles across TCs on v7x
            vmem_limit_bytes=int(vmem_limit),
        ),
        cost_estimate=cost,
    )(xb, w1f, b1f, w2p, b2p)

    # Slice the valid (B, C) logits and restore the module's f32 output dtype.
    return out[:B, :C].astype(jnp.float32)


# --------------------------------------------------------------------------- #
# Init + references
# --------------------------------------------------------------------------- #
def init_params(key, input_dim, class_num, num_bottleneck):
    k1, k2, k3 = jax.random.split(key, 3)

    # add_block Linear: kaiming_normal_(a=0, mode='fan_out') -> std=sqrt(2/fan_out)
    w1_std = (2.0 / num_bottleneck) ** 0.5
    w1 = w1_std * jax.random.normal(k1, (input_dim, num_bottleneck), jnp.float32)
    b1 = jnp.zeros((1, num_bottleneck), jnp.float32)

    # BatchNorm1d: weight ~ N(1.0, 0.02), bias=0, running_mean=0, running_var=1
    gamma = 1.0 + 0.02 * jax.random.normal(k2, (1, num_bottleneck), jnp.float32)
    beta = jnp.zeros((1, num_bottleneck), jnp.float32)
    mean = jnp.zeros((1, num_bottleneck), jnp.float32)
    var = jnp.ones((1, num_bottleneck), jnp.float32)

    # classifier Linear: normal_(std=0.001), bias=0
    w2 = 0.001 * jax.random.normal(k3, (num_bottleneck, class_num), jnp.float32)
    b2 = jnp.zeros((1, class_num), jnp.float32)

    return (w1, b1, gamma, beta, mean, var, w2, b2)


def mlp_reference_f32(x, params):
    """Exact f32 eval-mode forward (matches the PyTorch module)."""
    w1, b1, gamma, beta, mean, var, w2, b2 = params
    h = x @ w1 + b1
    h = (h - mean) * jax.lax.rsqrt(var + BN_EPS) * gamma + beta
    h = jnp.where(h >= 0.0, h, LEAKY_SLOPE * h)
    return h @ w2 + b2


def mlp_reference_matched(x, params):
    """Pure-JAX reference using the SAME folding + dtype choices as mlp_forward."""
    C = params[6].shape[1]
    C_pad = _round_up(C, 128)
    _, bf16_epilogue = _hw_config()
    epi_dtype = jnp.bfloat16 if bf16_epilogue else jnp.float32
    w1f, b1f, w2p, b2p = _fold_and_cast(params, C_pad, epi_dtype)

    xb = x.astype(jnp.bfloat16)
    h = jnp.dot(xb, w1f, preferred_element_type=jnp.float32)
    h = h.astype(epi_dtype) + b1f
    h = jnp.maximum(h, h * LEAKY_SLOPE)
    h = h.astype(jnp.bfloat16)
    o = jnp.dot(h, w2p, preferred_element_type=jnp.float32) + b2p
    o = o.astype(jnp.bfloat16)
    return o[:, :C].astype(jnp.float32)


# --------------------------------------------------------------------------- #
# Smoke test
# --------------------------------------------------------------------------- #
if __name__ == "__main__":
    key = jax.random.PRNGKey(0)
    kx, kp = jax.random.split(key)

    B, D_in, H, C = 8, 64, 512, 16  # batch, input_dim, num_bottleneck, class_num

    x = jax.random.normal(kx, (B, D_in), jnp.float32)
    params = init_params(kp, D_in, C, H)

    out = jax.block_until_ready(mlp_forward(x, params))
    assert out.shape == (B, C) and out.dtype == jnp.float32

    # Tight check against a pure-JAX reference with identical folding/dtypes.
    ref_matched = mlp_reference_matched(x, params)
    assert jnp.allclose(out, ref_matched, atol=1e-4, rtol=1e-3), "mismatch vs matched ref"

    # Sanity check against the exact f32 reference (bf16 quantization error only).
    ref_f32 = mlp_reference_f32(x, params)
    assert jnp.allclose(out, ref_f32, atol=5e-3, rtol=5e-2), "mismatch vs f32 ref"

    print("KERNEL_OK")
</pallas_src>

<mosaic_0001>
module attributes {stable_mosaic.version = 11 : i64} {
  func.func @mlp_kernel(%arg0: i32, %arg1: memref<8x64xbf16, #tpu.memory_space<vmem>>, %arg2: memref<64x512xbf16, #tpu.memory_space<vmem>>, %arg3: memref<1x512xf32, #tpu.memory_space<vmem>>, %arg4: memref<512x128xbf16, #tpu.memory_space<vmem>>, %arg5: memref<1x128xf32, #tpu.memory_space<vmem>>, %arg6: memref<8x128xbf16, #tpu.memory_space<vmem>>) attributes {dimension_semantics = [#tpu.dimension_semantics<parallel>], iteration_bounds = array<i64: 1>, scalar_prefetch = 0 : i64, scratch_operands = 0 : i64, tpu.core_type = #tpu.core_type<tc>, window_params = [{transform_indices = @transform_0, window_bounds = array<i64: 8, 64>}, {pipeline_mode = #tpu.pipeline_mode<synchronous>, transform_indices = @transform_1, window_bounds = array<i64: 64, 512>}, {pipeline_mode = #tpu.pipeline_mode<synchronous>, transform_indices = @transform_2, window_bounds = array<i64: 1, 512>}, {pipeline_mode = #tpu.pipeline_mode<synchronous>, transform_indices = @transform_3, window_bounds = array<i64: 512, 128>}, {pipeline_mode = #tpu.pipeline_mode<synchronous>, transform_indices = @transform_4, window_bounds = array<i64: 1, 128>}, {transform_indices = @transform_5, window_bounds = array<i64: 8, 128>}]} {
    %c0 = arith.constant 0 : index
    %c0_0 = arith.constant 0 : index
    %0 = vector.load %arg1[%c0, %c0_0] : memref<8x64xbf16, #tpu.memory_space<vmem>>, vector<8x64xbf16>
    %c0_1 = arith.constant 0 : index
    %c0_2 = arith.constant 0 : index
    %1 = vector.load %arg2[%c0_1, %c0_2] : memref<64x512xbf16, #tpu.memory_space<vmem>>, vector<64x512xbf16>
    %cst = arith.constant dense<0.000000e+00> : vector<8x512xf32>
    %2 = tpu.matmul %0, %1, %cst {dimension_numbers = #tpu.dot_dimension_numbers<[1], [0], [0], [1], [0, 0, 1, 1], [], []>} : vector<8x64xbf16>, vector<64x512xbf16>, vector<8x512xf32> -> vector<8x512xf32>
    %c0_3 = arith.constant 0 : index
    %c0_4 = arith.constant 0 : index
    %3 = vector.load %arg3[%c0_3, %c0_4] : memref<1x512xf32, #tpu.memory_space<vmem>>, vector<1x512xf32>
    %4 = vector.broadcast %3 : vector<1x512xf32> to vector<8x512xf32>
    %5 = arith.addf %2, %4 : vector<8x512xf32>
    %cst_5 = arith.constant 1.000000e-01 : f32
    %6 = vector.broadcast %cst_5 : f32 to vector<8x512xf32>
    %7 = arith.mulf %5, %6 : vector<8x512xf32>
    %8 = arith.maximumf %5, %7 : vector<8x512xf32>
    %9 = arith.truncf %8 : vector<8x512xf32> to vector<8x512xbf16>
    %c0_6 = arith.constant 0 : index
    %c0_7 = arith.constant 0 : index
    %10 = vector.load %arg4[%c0_6, %c0_7] : memref<512x128xbf16, #tpu.memory_space<vmem>>, vector<512x128xbf16>
    %cst_8 = arith.constant dense<0.000000e+00> : vector<8x128xf32>
    %11 = tpu.matmul %9, %10, %cst_8 {dimension_numbers = #tpu.dot_dimension_numbers<[1], [0], [0], [1], [0, 0, 1, 1], [], []>} : vector<8x512xbf16>, vector<512x128xbf16>, vector<8x128xf32> -> vector<8x128xf32>
    %c0_9 = arith.constant 0 : index
    %c0_10 = arith.constant 0 : index
    %12 = vector.load %arg5[%c0_9, %c0_10] : memref<1x128xf32, #tpu.memory_space<vmem>>, vector<1x128xf32>
    %13 = vector.broadcast %12 : vector<1x128xf32> to vector<8x128xf32>
    %14 = arith.addf %11, %13 : vector<8x128xf32>
    %15 = arith.truncf %14 : vector<8x128xf32> to vector<8x128xbf16>
    %c0_11 = arith.constant 0 : index
    %c0_12 = arith.constant 0 : index
    %16 = vector.load %arg6[%c0_11, %c0_12] : memref<8x128xbf16, #tpu.memory_space<vmem>>, vector<8x128xbf16>
    tpu.vector_store %arg6[%c0_11, %c0_12], %15 {strides = array<i32>} : memref<8x128xbf16, #tpu.memory_space<vmem>>, vector<8x128xbf16>,
    return
  }
  func.func @transform_0(%arg0: i32) -> (i32, i32) {
    %c0_i32 = arith.constant 0 : i32
    %c0_i32_0 = arith.constant 0 : i32
    return %arg0, %c0_i32 : i32, i32
  }
  func.func @transform_1(%arg0: i32) -> (i32, i32) {
    %c0_i32 = arith.constant 0 : i32
    %c0_i32_0 = arith.constant 0 : i32
    %c0_i32_1 = arith.constant 0 : i32
    return %c0_i32, %c0_i32_0 : i32, i32
  }
  func.func @transform_2(%arg0: i32) -> (i32, i32) {
    %c0_i32 = arith.constant 0 : i32
    %c0_i32_0 = arith.constant 0 : i32
    %c0_i32_1 = arith.constant 0 : i32
    return %c0_i32, %c0_i32_0 : i32, i32
  }
  func.func @transform_3(%arg0: i32) -> (i32, i32) {
    %c0_i32 = arith.constant 0 : i32
    %c0_i32_0 = arith.constant 0 : i32
    %c0_i32_1 = arith.constant 0 : i32
    return %c0_i32, %c0_i32_0 : i32, i32
  }
  func.func @transform_4(%arg0: i32) -> (i32, i32) {
    %c0_i32 = arith.constant 0 : i32
    %c0_i32_0 = arith.constant 0 : i32
    %c0_i32_1 = arith.constant 0 : i32
    return %c0_i32, %c0_i32_0 : i32, i32
  }
  func.func @transform_5(%arg0: i32) -> (i32, i32) {
    %c0_i32 = arith.constant 0 : i32
    %c0_i32_0 = arith.constant 0 : i32
    return %arg0, %c0_i32 : i32, i32
  }
}

</mosaic_0001>

<llo_original>
// kernel: tpu_custom_call.1
$region0: #{tpu_custom_call.1}
  #allocation0 [shape = 'u32[]', space=smem, size = 0x4, offset = 0x4, fixed_abs, tag = 'smem constant byte address 0x4 - core index']
  #allocation1 [shape = 'u32[144,128]{1,0:T(1,128)}', space=vmem, size = 0x12000, scoped, tag = 'internal scratch']
  %s0 = inlined_call_operand.hbm [shape: bf16[8,64], index: 0, kind: input, shape index: {}]
  %s1 = inlined_call_operand.hbm [shape: bf16[64,512], index: 1, kind: input, shape index: {}]
  %s2 = inlined_call_operand.hbm [shape: f32[1,512], index: 2, kind: input, shape index: {}]
  %s3 = inlined_call_operand.hbm [shape: bf16[512,128], index: 3, kind: input, shape index: {}]
  %s4 = inlined_call_operand.vmem [shape: f32[1,128], index: 4, kind: input, shape index: {}]
  %s5 = inlined_call_operand.hbm [shape: bf16[8,128], index: 5, kind: output, shape index: {}]
  %s6 = sld [smem:[#allocation0]]
  $region46: #{tpu_custom_call.1} parent=0
    _
  %s8 = ssub.s32 1, %s6
  %s9 = scalar_select 0, %s8, %s6
  $region1: #{tpu_custom_call.1} parent=0
    #allocation2 [shape = 'u8[2048]{0}', space=vmem, size = 0x800, scoped, tag = 'input window, operand 0, single buffered']
    #allocation3 [shape = 's32[1]{0}', space=sflag, size = 0x4, scoped, tag = 'scoped memory for tpu_custom_call.1']
    #allocation4 [shape = 's32[1]{0}', space=sflag, size = 0x4, scoped, tag = 'scoped memory for tpu_custom_call.1']
    #allocation5 [shape = 'u8[65536]{0}', space=vmem, size = 0x10000, scoped, tag = 'input window, operand 1, single buffered']
    #allocation6 [shape = 's32[1]{0}', space=sflag, size = 0x4, scoped, tag = 'scoped memory for tpu_custom_call.1']
    #allocation7 [shape = 'u8[2048]{0}', space=vmem, size = 0x800, scoped, tag = 'input window, operand 2, single buffered']
    #allocation8 [shape = 'u8[131072]{0}', space=vmem, size = 0x20000, scoped, tag = 'input window, operand 3, single buffered']
    #allocation9 [shape = 's32[1]{0}', space=sflag, size = 0x4, scoped, tag = 'scoped memory for tpu_custom_call.1']
    #allocation10 [shape = 'u8[2048]{0}', space=vmem, size = 0x800, scoped, tag = 'output window, operand 0, single buffered']
    %10 = vsyncpa [#allocation3], 0
    %11 = vsyncpa [#allocation6], 0
    %12 = vsyncpa [#allocation9], 0
    %13 = vsyncpa [#allocation4], 0
    // Predicated region
    $region2: #{tpu_custom_call.1} parent=1 // pred_check
      _
    $region3: #{tpu_custom_call.1} parent=1 // pred_check_branch
      %15 = sbr.rel (0) target = $region5
    $region4: #{tpu_custom_call.1} parent=1 // pred_region
      %s17 = ssub.s32 64, 64
      %18 = vsyncadd [#allocation3], %s17
      %s20 = sshll.u32 [#allocation2], 4
      %s21 = int_to_ptr.vmem [resolvable:$true] %s20
      %23 = dma.hbm_to_vmem [thread:$0]  %s0, 64, %s21, [#allocation3]
    $region5: #{tpu_custom_call.1} parent=1 // pred_fallthru
      _
    // Predicated region
    $region6: #{tpu_custom_call.1} parent=1 // pred_check
      _
    $region7: #{tpu_custom_call.1} parent=1 // pred_check_branch
      %25 = sbr.rel (0) target = $region9
    $region8: #{tpu_custom_call.1} parent=1 // pred_region
      %s27 = ssub.s32 2048, 2048
      %28 = vsyncadd [#allocation6], %s27
      %s29 = sshll.u32 [#allocation5], 4
      %s30 = int_to_ptr.vmem [resolvable:$true] %s29
      %35 = dma.hbm_to_vmem [thread:$0]  %s1, 2048, %s30, [#allocation6], 256, 256, 16
    $region9: #{tpu_custom_call.1} parent=1 // pred_fallthru
      _
    // Predicated region
    $region10: #{tpu_custom_call.1} parent=1 // pred_check
      _
    $region11: #{tpu_custom_call.1} parent=1 // pred_check_branch
      %37 = sbr.rel (0) target = $region13
    $region12: #{tpu_custom_call.1} parent=1 // pred_region
      %s39 = ssub.s32 64, 64
      %40 = vsyncadd [#allocation6], %s39
      %s42 = sshll.u32 [#allocation7], 4
      %s43 = int_to_ptr.vmem [resolvable:$true] %s42
      %45 = dma.hbm_to_vmem [thread:$0]  %s2, 64, %s43, [#allocation6]
    $region13: #{tpu_custom_call.1} parent=1 // pred_fallthru
      _
    // Predicated region
    $region14: #{tpu_custom_call.1} parent=1 // pred_check
      _
    $region15: #{tpu_custom_call.1} parent=1 // pred_check_branch
      %47 = sbr.rel (0) target = $region17
    $region16: #{tpu_custom_call.1} parent=1 // pred_region
      %s49 = ssub.s32 4096, 4096
      %50 = vsyncadd [#allocation9], %s49
      %s51 = sshll.u32 [#allocation8], 4
      %s52 = int_to_ptr.vmem [resolvable:$true] %s51
      %57 = dma.hbm_to_vmem [thread:$0]  %s3, 4096, %s52, [#allocation9], 64, 64, 4
    $region17: #{tpu_custom_call.1} parent=1 // pred_fallthru
      _
    // Predicated region
    $region18: #{tpu_custom_call.1} parent=1 // pred_check
      _
    $region19: #{tpu_custom_call.1} parent=1 // pred_check_branch
      %59 = sbr.rel (0) target = $region21
    $region20: #{tpu_custom_call.1} parent=1 // pred_region
      _
    $region21: #{tpu_custom_call.1} parent=1 // pred_fallthru
      _
    // Predicated region
    $region22: #{tpu_custom_call.1} parent=1 // pred_check
      _
    $region23: #{tpu_custom_call.1} parent=1 // pred_check_branch
      %61 = sbr.rel (0) target = $region25
    $region24: #{tpu_custom_call.1} parent=1 // pred_region
      %62 = dma.done [#allocation3], 64
    $region25: #{tpu_custom_call.1} parent=1 // pred_fallthru
      _
    // Predicated region
    $region26: #{tpu_custom_call.1} parent=1 // pred_check
      _
    $region27: #{tpu_custom_call.1} parent=1 // pred_check_branch
      %64 = sbr.rel (0) target = $region29
    $region28: #{tpu_custom_call.1} parent=1 // pred_region
      %65 = dma.done [#allocation6], 2048
    $region29: #{tpu_custom_call.1} parent=1 // pred_fallthru
      _
    // Predicated region
    $region30: #{tpu_custom_call.1} parent=1 // pred_check
      _
    $region31: #{tpu_custom_call.1} parent=1 // pred_check_branch
      %67 = sbr.rel (0) target = $region33
    $region32: #{tpu_custom_call.1} parent=1 // pred_region
      %68 = dma.done [#allocation6], 64
    $region33: #{tpu_custom_call.1} parent=1 // pred_fallthru
      _
    // Predicated region
    $region34: #{tpu_custom_call.1} parent=1 // pred_check
      _
    $region35: #{tpu_custom_call.1} parent=1 // pred_check_branch
      %70 = sbr.rel (0) target = $region37
    $region36: #{tpu_custom_call.1} parent=1 // pred_region
      %71 = dma.done [#allocation9], 4096
    $region37: #{tpu_custom_call.1} parent=1 // pred_fallthru
      _
    %v73 = vld [vmem:[#allocation2] sm:$0xf]
    %v74 = vld [vmem:[#allocation5] sm:$0xff]
    %v75 = vld [vmem:[#allocation5 + $0x8] sm:$0xff]
    %v76 = vld [vmem:[#allocation5 + $0x10] sm:$0xff]
    %v77 = vld [vmem:[#allocation5 + $0x18] sm:$0xff]
    %v78 = vld [vmem:[#allocation5 + $0x20] sm:$0xff]
    %v79 = vld [vmem:[#allocation5 + $0x28] sm:$0xff]
    %v80 = vld [vmem:[#allocation5 + $0x30] sm:$0xff]
    %v81 = vld [vmem:[#allocation5 + $0x38] sm:$0xff]
    %v82 = vld [vmem:[#allocation5 + $0x40] sm:$0xff]
    %v83 = vld [vmem:[#allocation5 + $0x48] sm:$0xff]
    %v84 = vld [vmem:[#allocation5 + $0x50] sm:$0xff]
    %v85 = vld [vmem:[#allocation5 + $0x58] sm:$0xff]
    %v86 = vld [vmem:[#allocation5 + $0x60] sm:$0xff]
    %v87 = vld [vmem:[#allocation5 + $0x68] sm:$0xff]
    %v88 = vld [vmem:[#allocation5 + $0x70] sm:$0xff]
    %v89 = vld [vmem:[#allocation5 + $0x78] sm:$0xff]
    %v90 = vld [vmem:[#allocation7] sm:$0xf]
    %v92 = vlaneseq
    %v93 = vshrl.u32 %v92, 7
    %v94 = vsub.s32 0, %v93
    %v95 = vrot.slane %v90, %v94
    %v96 = vlaneseq
    %v97 = vshrl.u32 %v96, 7
    %v98 = vsub.s32 1, %v97
    %v99 = vrot.slane %v90, %v98
    %v100 = vlaneseq
    %v101 = vshrl.u32 %v100, 7
    %v102 = vsub.s32 2, %v101
    %v103 = vrot.slane %v90, %v102
    %v104 = vlaneseq
    %v105 = vshrl.u32 %v104, 7
    %v106 = vsub.s32 3, %v105
    %v107 = vrot.slane %v90, %v106
    %v128 = vunpack.c.l.b16 %v74
    %v129 = vunpack.c.h.b16 %v74
    %v130 = vunpack.c.l.b16 %v75
    %v131 = vunpack.c.h.b16 %v75
    %v132 = vunpack.c.l.b16 %v76
    %v133 = vunpack.c.h.b16 %v76
    %v134 = vunpack.c.l.b16 %v77
    %v135 = vunpack.c.h.b16 %v77
    %v136 = vunpack.c.l.b16 %v78
    %v137 = vunpack.c.h.b16 %v78
    %v138 = vunpack.c.l.b16 %v79
    %v139 = vunpack.c.h.b16 %v79
    %v140 = vunpack.c.l.b16 %v80
    %v141 = vunpack.c.h.b16 %v80
    %v142 = vunpack.c.l.b16 %v81
    %v143 = vunpack.c.h.b16 %v81
    %v144 = vunpack.c.l.b16 %v82
    %v145 = vunpack.c.h.b16 %v82
    %v146 = vunpack.c.l.b16 %v83
    %v147 = vunpack.c.h.b16 %v83
    %v148 = vunpack.c.l.b16 %v84
    %v149 = vunpack.c.h.b16 %v84
    %v150 = vunpack.c.l.b16 %v85
    %v151 = vunpack.c.h.b16 %v85
    %v152 = vunpack.c.l.b16 %v86
    %v153 = vunpack.c.h.b16 %v86
    %v154 = vunpack.c.l.b16 %v87
    %v155 = vunpack.c.h.b16 %v87
    %v156 = vunpack.c.l.b16 %v88
    %v157 = vunpack.c.h.b16 %v88
    %v158 = vunpack.c.l.b16 %v89
    %v159 = vunpack.c.h.b16 %v89
    %v160 = vpack.c.b16 %v132, %v128
    %v161 = vpack.c.b16 %v133, %v129
    %v162 = vpack.c.b16 %v134, %v130
    %v163 = vpack.c.b16 %v135, %v131
    %v164 = vpack.c.b16 %v140, %v136
    %v165 = vpack.c.b16 %v141, %v137
    %v166 = vpack.c.b16 %v142, %v138
    %v167 = vpack.c.b16 %v143, %v139
    %v168 = vpack.c.b16 %v148, %v144
    %v169 = vpack.c.b16 %v149, %v145
    %v170 = vpack.c.b16 %v150, %v146
    %v171 = vpack.c.b16 %v151, %v147
    %v172 = vpack.c.b16 %v156, %v152
    %v173 = vpack.c.b16 %v157, %v153
    %v174 = vpack.c.b16 %v158, %v154
    %v175 = vpack.c.b16 %v159, %v155
    %vm192 = vcmask 523264
    %v194 = vsel %vm192, %v73, 0
    %196 = vmatprep.subr.bf16.mxu0 0
    %197 = vmatpush1.bf16.msra.mxu0 0
    %198 = vmatprep.subr.bf16.mxu0 0
    %199 = vmatpush1.bf16.msra.mxu0 0
    %200 = vmatprep.subr.bf16.mxu0 0
    %201 = vmatpush1.bf16.msra.mxu0 0
    %202 = vmatprep.subr.bf16.mxu0 0
    %203 = vmatpush1.bf16.msra.mxu0 0
    %204 = vmatprep.subr.bf16.mxu0 %v173
    %205 = vmatpush1.bf16.msra.mxu0 %v172
    %206 = vmatprep.subr.bf16.mxu0 %v169
    %207 = vmatpush1.bf16.msra.mxu0 %v168
    %208 = vmatprep.subr.bf16.mxu0 %v165
    %209 = vmatpush1.bf16.msra.mxu0 %v164
    %210 = vmatprep.subr.bf16.mxu0 %v161
    %211 = vmatpush1.bf16.msra.mxu0 %v160
    %212 = vmatprep.subr.bf16.mxu0 0
    %213 = vmatpush2.bf16.msra.mxu0 0
    %214 = vmatprep.subr.bf16.mxu0 0
    %215 = vmatpush2.bf16.msra.mxu0 0
    %216 = vmatprep.subr.bf16.mxu0 0
    %217 = vmatpush2.bf16.msra.mxu0 0
    %218 = vmatprep.subr.bf16.mxu0 0
    %219 = vmatpush2.bf16.msra.mxu0 0
    %220 = vmatprep.subr.bf16.mxu0 0
    %221 = vmatpush2.bf16.msra.mxu0 0
    %222 = vmatprep.subr.bf16.mxu0 0
    %223 = vmatpush2.bf16.msra.mxu0 0
    %224 = vmatprep.subr.bf16.mxu0 0
    %225 = vmatpush2.bf16.msra.mxu0 0
    %226 = vmatprep.subr.bf16.mxu0 0
    %227 = vmatpush2.bf16.msra.mxu0 0
    %228 = vmatprep.mubr.bf16.mxu0 0
    %229 = vmatmul.mubr.bf16.gmra.mxu0 %v194
    %v230 = vpop.f32.mrf.mxu0
    %v231 = vadd.f32 %v95, %v230
    %v232 = vpop.f32.mrf.mxu0
    %v233 = vadd.f32 %v99, %v232
    %v234 = vpop.f32.mrf.mxu0
    %v235 = vpop.f32.mrf.mxu0
    %236 = vdwg.mxu0
    %237 = vmatprep.subr.bf16.mxu0 0
    %238 = vmatpush1.bf16.msra.mxu0 0
    %239 = vmatprep.subr.bf16.mxu0 0
    %240 = vmatpush1.bf16.msra.mxu0 0
    %241 = vmatprep.subr.bf16.mxu0 0
    %242 = vmatpush1.bf16.msra.mxu0 0
    %243 = vmatprep.subr.bf16.mxu0 0
    %244 = vmatpush1.bf16.msra.mxu0 0
    %245 = vmatprep.subr.bf16.mxu0 %v175
    %246 = vmatpush1.bf16.msra.mxu0 %v174
    %247 = vmatprep.subr.bf16.mxu0 %v171
    %248 = vmatpush1.bf16.msra.mxu0 %v170
    %249 = vmatprep.subr.bf16.mxu0 %v167
    %250 = vmatpush1.bf16.msra.mxu0 %v166
    %251 = vmatprep.subr.bf16.mxu0 %v163
    %252 = vmatpush1.bf16.msra.mxu0 %v162
    %253 = vmatprep.subr.bf16.mxu0 0
    %254 = vmatpush2.bf16.msra.mxu0 0
    %255 = vmatprep.subr.bf16.mxu0 0
    %256 = vmatpush2.bf16.msra.mxu0 0
    %257 = vmatprep.subr.bf16.mxu0 0
    %258 = vmatpush2.bf16.msra.mxu0 0
    %259 = vmatprep.subr.bf16.mxu0 0
    %260 = vmatpush2.bf16.msra.mxu0 0
    %261 = vmatprep.subr.bf16.mxu0 0
    %262 = vmatpush2.bf16.msra.mxu0 0
    %263 = vmatprep.subr.bf16.mxu0 0
    %264 = vmatpush2.bf16.msra.mxu0 0
    %265 = vmatprep.subr.bf16.mxu0 0
    %266 = vmatpush2.bf16.msra.mxu0 0
    %267 = vmatprep.subr.bf16.mxu0 0
    %268 = vmatpush2.bf16.msra.mxu0 0
    %269 = vmatprep.mubr.bf16.mxu0 0
    %270 = vmatmul.mubr.bf16.gmra.mxu0 %v194
    %v271 = vpop.f32.mrf.mxu0
    %v272 = vadd.f32 %v103, %v271
    %v273 = vpop.f32.mrf.mxu0
    %v274 = vadd.f32 %v107, %v273
    %v275 = vpop.f32.mrf.mxu0
    %v276 = vpop.f32.mrf.mxu0
    %277 = vdwg.mxu0
    %v278 = vmul.f32 %v231, 0.1
    %v279 = vmul.f32 %v233, 0.1
    %v280 = vmul.f32 %v272, 0.1
    %v281 = vmul.f32 %v274, 0.1
    %v282 = vmax.f32 %v231, %v278
    %v283 = vmax.f32 %v233, %v279
    %v284 = vmax.f32 %v272, %v280
    %v285 = vmax.f32 %v274, %v281
    %v286 = vpack.c.bf16 %v282, %v282
    %v287 = vpack.c.bf16 %v283, %v283
    %v288 = vpack.c.bf16 %v284, %v284
    %v289 = vpack.c.bf16 %v285, %v285
    %v290 = vld [vmem:[#allocation8] sm:$0xf]
    %v291 = vld [vmem:[#allocation8 + $0x4] sm:$0xf]
    %v292 = vld [vmem:[#allocation8 + $0x8] sm:$0xf]
    %v293 = vld [vmem:[#allocation8 + $0xc] sm:$0xf]
    %v294 = vld [vmem:[#allocation8 + $0x10] sm:$0xf]
    %v295 = vld [vmem:[#allocation8 + $0x14] sm:$0xf]
    %v296 = vld [vmem:[#allocation8 + $0x18] sm:$0xf]
    %v297 = vld [vmem:[#allocation8 + $0x1c] sm:$0xf]
    %v298 = vld [vmem:[#allocation8 + $0x20] sm:$0xf]
    %v299 = vld [vmem:[#allocation8 + $0x24] sm:$0xf]
    %v300 = vld [vmem:[#allocation8 + $0x28] sm:$0xf]
    %v301 = vld [vmem:[#allocation8 + $0x2c] sm:$0xf]
    %v302 = vld [vmem:[#allocation8 + $0x30] sm:$0xf]
    %v303 = vld [vmem:[#allocation8 + $0x34] sm:$0xf]
    %v304 = vld [vmem:[#allocation8 + $0x38] sm:$0xf]
    %v305 = vld [vmem:[#allocation8 + $0x3c] sm:$0xf]
    %v306 = vld [vmem:[#allocation8 + $0x40] sm:$0xf]
    %v307 = vld [vmem:[#allocation8 + $0x44] sm:$0xf]
    %v308 = vld [vmem:[#allocation8 + $0x48] sm:$0xf]
    %v309 = vld [vmem:[#allocation8 + $0x4c] sm:$0xf]
    %v310 = vld [vmem:[#allocation8 + $0x50] sm:$0xf]
    %v311 = vld [vmem:[#allocation8 + $0x54] sm:$0xf]
    %v312 = vld [vmem:[#allocation8 + $0x58] sm:$0xf]
    %v313 = vld [vmem:[#allocation8 + $0x5c] sm:$0xf]
    %v314 = vld [vmem:[#allocation8 + $0x60] sm:$0xf]
    %v315 = vld [vmem:[#allocation8 + $0x64] sm:$0xf]
    %v316 = vld [vmem:[#allocation8 + $0x68] sm:$0xf]
    %v317 = vld [vmem:[#allocation8 + $0x6c] sm:$0xf]
    %v318 = vld [vmem:[#allocation8 + $0x70] sm:$0xf]
    %v319 = vld [vmem:[#allocation8 + $0x74] sm:$0xf]
    %v320 = vld [vmem:[#allocation8 + $0x78] sm:$0xf]
    %v321 = vld [vmem:[#allocation8 + $0x7c] sm:$0xf]
    %v322 = vld [vmem:[#allocation8 + $0x80] sm:$0xf]
    %v323 = vld [vmem:[#allocation8 + $0x84] sm:$0xf]
    %v324 = vld [vmem:[#allocation8 + $0x88] sm:$0xf]
    %v325 = vld [vmem:[#allocation8 + $0x8c] sm:$0xf]
    %v326 = vld [vmem:[#allocation8 + $0x90] sm:$0xf]
    %v327 = vld [vmem:[#allocation8 + $0x94] sm:$0xf]
    %v328 = vld [vmem:[#allocation8 + $0x98] sm:$0xf]
    %v329 = vld [vmem:[#allocation8 + $0x9c] sm:$0xf]
    %v330 = vld [vmem:[#allocation8 + $0xa0] sm:$0xf]
    %v331 = vld [vmem:[#allocation8 + $0xa4] sm:$0xf]
    %v332 = vld [vmem:[#allocation8 + $0xa8] sm:$0xf]
    %v333 = vld [vmem:[#allocation8 + $0xac] sm:$0xf]
    %v334 = vld [vmem:[#allocation8 + $0xb0] sm:$0xf]
    %v335 = vld [vmem:[#allocation8 + $0xb4] sm:$0xf]
    %v336 = vld [vmem:[#allocation8 + $0xb8] sm:$0xf]
    %v337 = vld [vmem:[#allocation8 + $0xbc] sm:$0xf]
    %v338 = vld [vmem:[#allocation8 + $0xc0] sm:$0xf]
    %v339 = vld [vmem:[#allocation8 + $0xc4] sm:$0xf]
    %v340 = vld [vmem:[#allocation8 + $0xc8] sm:$0xf]
    %v341 = vld [vmem:[#allocation8 + $0xcc] sm:$0xf]
    %v342 = vld [vmem:[#allocation8 + $0xd0] sm:$0xf]
    %v343 = vld [vmem:[#allocation8 + $0xd4] sm:$0xf]
    %v344 = vld [vmem:[#allocation8 + $0xd8] sm:$0xf]
    %v345 = vld [vmem:[#allocation8 + $0xdc] sm:$0xf]
    %v346 = vld [vmem:[#allocation8 + $0xe0] sm:$0xf]
    %v347 = vld [vmem:[#allocation8 + $0xe4] sm:$0xf]
    %v348 = vld [vmem:[#allocation8 + $0xe8] sm:$0xf]
    %v349 = vld [vmem:[#allocation8 + $0xec] sm:$0xf]
    %v350 = vld [vmem:[#allocation8 + $0xf0] sm:$0xf]
    %v351 = vld [vmem:[#allocation8 + $0xf4] sm:$0xf]
    %v352 = vld [vmem:[#allocation8 + $0xf8] sm:$0xf]
    %v353 = vld [vmem:[#allocation8 + $0xfc] sm:$0xf]
    %v354 = vld [vmem:[%s4] sm:$0x1]
    %v356 = vlaneseq
    %v357 = vshrl.u32 %v356, 7
    %v358 = vsub.s32 0, %v357
    %v359 = vrot.slane %v354, %v358
    %v425 = vunpack.c.l.b16 %v290
    %v426 = vunpack.c.l.b16 %v291
    %v427 = vunpack.c.l.b16 %v292
    %v428 = vunpack.c.l.b16 %v293
    %v429 = vunpack.c.l.b16 %v294
    %v430 = vunpack.c.l.b16 %v295
    %v431 = vunpack.c.l.b16 %v296
    %v432 = vunpack.c.l.b16 %v297
    %v433 = vunpack.c.l.b16 %v298
    %v434 = vunpack.c.l.b16 %v299
    %v435 = vunpack.c.l.b16 %v300
    %v436 = vunpack.c.l.b16 %v301
    %v437 = vunpack.c.l.b16 %v302
    %v438 = vunpack.c.l.b16 %v303
    %v439 = vunpack.c.l.b16 %v304
    %v440 = vunpack.c.l.b16 %v305
    %v441 = vunpack.c.l.b16 %v306
    %v442 = vunpack.c.l.b16 %v307
    %v443 = vunpack.c.l.b16 %v308
    %v444 = vunpack.c.l.b16 %v309
    %v445 = vunpack.c.l.b16 %v310
    %v446 = vunpack.c.l.b16 %v311
    %v447 = vunpack.c.l.b16 %v312
    %v448 = vunpack.c.l.b16 %v313
    %v449 = vunpack.c.l.b16 %v314
    %v450 = vunpack.c.l.b16 %v315
    %v451 = vunpack.c.l.b16 %v316
    %v452 = vunpack.c.l.b16 %v317
    %v453 = vunpack.c.l.b16 %v318
    %v454 = vunpack.c.l.b16 %v319
    %v455 = vunpack.c.l.b16 %v320
    %v456 = vunpack.c.l.b16 %v321
    %v457 = vunpack.c.l.b16 %v322
    %v458 = vunpack.c.l.b16 %v323
    %v459 = vunpack.c.l.b16 %v324
    %v460 = vunpack.c.l.b16 %v325
    %v461 = vunpack.c.l.b16 %v326
    %v462 = vunpack.c.l.b16 %v327
    %v463 = vunpack.c.l.b16 %v328
    %v464 = vunpack.c.l.b16 %v329
    %v465 = vunpack.c.l.b16 %v330
    %v466 = vunpack.c.l.b16 %v331
    %v467 = vunpack.c.l.b16 %v332
    %v468 = vunpack.c.l.b16 %v333
    %v469 = vunpack.c.l.b16 %v334
    %v470 = vunpack.c.l.b16 %v335
    %v471 = vunpack.c.l.b16 %v336
    %v472 = vunpack.c.l.b16 %v337
    %v473 = vunpack.c.l.b16 %v338
    %v474 = vunpack.c.l.b16 %v339
    %v475 = vunpack.c.l.b16 %v340
    %v476 = vunpack.c.l.b16 %v341
    %v477 = vunpack.c.l.b16 %v342
    %v478 = vunpack.c.l.b16 %v343
    %v479 = vunpack.c.l.b16 %v344
    %v480 = vunpack.c.l.b16 %v345
    %v481 = vunpack.c.l.b16 %v346
    %v482 = vunpack.c.l.b16 %v347
    %v483 = vunpack.c.l.b16 %v348
    %v484 = vunpack.c.l.b16 %v349
    %v485 = vunpack.c.l.b16 %v350
    %v486 = vunpack.c.l.b16 %v351
    %v487 = vunpack.c.l.b16 %v352
    %v488 = vunpack.c.l.b16 %v353
    %v489 = vpack.c.b16 %v426, %v425
    %v490 = vpack.c.b16 %v428, %v427
    %v491 = vpack.c.b16 %v430, %v429
    %v492 = vpack.c.b16 %v432, %v431
    %v493 = vpack.c.b16 %v434, %v433
    %v494 = vpack.c.b16 %v436, %v435
    %v495 = vpack.c.b16 %v438, %v437
    %v496 = vpack.c.b16 %v440, %v439
    %v497 = vpack.c.b16 %v442, %v441
    %v498 = vpack.c.b16 %v444, %v443
    %v499 = vpack.c.b16 %v446, %v445
    %v500 = vpack.c.b16 %v448, %v447
    %v501 = vpack.c.b16 %v450, %v449
    %v502 = vpack.c.b16 %v452, %v451
    %v503 = vpack.c.b16 %v454, %v453
    %v504 = vpack.c.b16 %v456, %v455
    %v505 = vpack.c.b16 %v458, %v457
    %v506 = vpack.c.b16 %v460, %v459
    %v507 = vpack.c.b16 %v462, %v461
    %v508 = vpack.c.b16 %v464, %v463
    %v509 = vpack.c.b16 %v466, %v465
    %v510 = vpack.c.b16 %v468, %v467
    %v511 = vpack.c.b16 %v470, %v469
    %v512 = vpack.c.b16 %v472, %v471
    %v513 = vpack.c.b16 %v474, %v473
    %v514 = vpack.c.b16 %v476, %v475
    %v515 = vpack.c.b16 %v478, %v477
    %v516 = vpack.c.b16 %v480, %v479
    %v517 = vpack.c.b16 %v482, %v481
    %v518 = vpack.c.b16 %v484, %v483
    %v519 = vpack.c.b16 %v486, %v485
    %v520 = vpack.c.b16 %v488, %v487
    %553 = vmatprep.subr.bf16.mxu0 0
    %554 = vmatpush1.bf16.msra.mxu0 %v496
    %555 = vmatprep.subr.bf16.mxu0 0
    %556 = vmatpush1.bf16.msra.mxu0 %v495
    %557 = vmatprep.subr.bf16.mxu0 0
    %558 = vmatpush1.bf16.msra.mxu0 %v494
    %559 = vmatprep.subr.bf16.mxu0 0
    %560 = vmatpush1.bf16.msra.mxu0 %v493
    %561 = vmatprep.subr.bf16.mxu0 0
    %562 = vmatpush1.bf16.msra.mxu0 %v492
    %563 = vmatprep.subr.bf16.mxu0 0
    %564 = vmatpush1.bf16.msra.mxu0 %v491
    %565 = vmatprep.subr.bf16.mxu0 0
    %566 = vmatpush1.bf16.msra.mxu0 %v490
    %567 = vmatprep.subr.bf16.mxu0 0
    %568 = vmatpush1.bf16.msra.mxu0 %v489
    %569 = vmatprep.subr.bf16.mxu0 0
    %570 = vmatpush2.bf16.msra.mxu0 %v504
    %571 = vmatprep.subr.bf16.mxu0 0
    %572 = vmatpush2.bf16.msra.mxu0 %v503
    %573 = vmatprep.subr.bf16.mxu0 0
    %574 = vmatpush2.bf16.msra.mxu0 %v502
    %575 = vmatprep.subr.bf16.mxu0 0
    %576 = vmatpush2.bf16.msra.mxu0 %v501
    %577 = vmatprep.subr.bf16.mxu0 0
    %578 = vmatpush2.bf16.msra.mxu0 %v500
    %579 = vmatprep.subr.bf16.mxu0 0
    %580 = vmatpush2.bf16.msra.mxu0 %v499
    %581 = vmatprep.subr.bf16.mxu0 0
    %582 = vmatpush2.bf16.msra.mxu0 %v498
    %583 = vmatprep.subr.bf16.mxu0 0
    %584 = vmatpush2.bf16.msra.mxu0 %v497
    %585 = vmatprep.mubr.bf16.mxu0 %v287
    %586 = vmatmul.mubr.bf16.gmra.mxu0 %v286
    %v587 = vpop.f32.mrf.mxu0
    %v588 = vadd.f32 %v359, %v587
    %v589 = vpop.f32.mrf.mxu0
    %v590 = vpop.f32.mrf.mxu0
    %v591 = vpop.f32.mrf.mxu0
    %592 = vdwg.mxu0
    %593 = vmatprep.subr.bf16.mxu0 0
    %594 = vmatpush1.bf16.msra.mxu0 %v512
    %595 = vmatprep.subr.bf16.mxu0 0
    %596 = vmatpush1.bf16.msra.mxu0 %v511
    %597 = vmatprep.subr.bf16.mxu0 0
    %598 = vmatpush1.bf16.msra.mxu0 %v510
    %599 = vmatprep.subr.bf16.mxu0 0
    %600 = vmatpush1.bf16.msra.mxu0 %v509
    %601 = vmatprep.subr.bf16.mxu0 0
    %602 = vmatpush1.bf16.msra.mxu0 %v508
    %603 = vmatprep.subr.bf16.mxu0 0
    %604 = vmatpush1.bf16.msra.mxu0 %v507
    %605 = vmatprep.subr.bf16.mxu0 0
    %606 = vmatpush1.bf16.msra.mxu0 %v506
    %607 = vmatprep.subr.bf16.mxu0 0
    %608 = vmatpush1.bf16.msra.mxu0 %v505
    %609 = vmatprep.subr.bf16.mxu0 0
    %610 = vmatpush2.bf16.msra.mxu0 %v520
    %611 = vmatprep.subr.bf16.mxu0 0
    %612 = vmatpush2.bf16.msra.mxu0 %v519
    %613 = vmatprep.subr.bf16.mxu0 0
    %614 = vmatpush2.bf16.msra.mxu0 %v518
    %615 = vmatprep.subr.bf16.mxu0 0
    %616 = vmatpush2.bf16.msra.mxu0 %v517
    %617 = vmatprep.subr.bf16.mxu0 0
    %618 = vmatpush2.bf16.msra.mxu0 %v516
    %619 = vmatprep.subr.bf16.mxu0 0
    %620 = vmatpush2.bf16.msra.mxu0 %v515
    %621 = vmatprep.subr.bf16.mxu0 0
    %622 = vmatpush2.bf16.msra.mxu0 %v514
    %623 = vmatprep.subr.bf16.mxu0 0
    %624 = vmatpush2.bf16.msra.mxu0 %v513
    %625 = vmatprep.mubr.bf16.mxu0 %v289
    %626 = vmatmul.mubr.bf16.gmra.mxu0 %v288
    %v627 = vpop.f32.mrf.mxu0
    %v628 = vadd.f32 %v588, %v627
    %v629 = vpop.f32.mrf.mxu0
    %v630 = vpop.f32.mrf.mxu0
    %v631 = vpop.f32.mrf.mxu0
    %632 = vdwg.mxu0
    %v633 = vpack.c.bf16 %v628, %v628
    %634 = vst [vmem:[#allocation10] sm:$0xf] %v633
    // Predicated region
    $region38: #{tpu_custom_call.1} parent=1 // pred_check
      _
    $region39: #{tpu_custom_call.1} parent=1 // pred_check_branch
      %636 = sbr.rel (0) target = $region41
    $region40: #{tpu_custom_call.1} parent=1 // pred_region
      %s638 = ssub.s32 64, 64
      %639 = vsyncadd [#allocation4], %s638
      %s641 = sshll.u32 [#allocation10], 4
      %s642 = int_to_ptr.vmem [resolvable:$true] %s641
      %644 = dma.vmem_to_hbm [thread:$0]  %s642, 64, %s5, [#allocation4]
    $region41: #{tpu_custom_call.1} parent=1 // pred_fallthru
      _
    // Predicated region
    $region42: #{tpu_custom_call.1} parent=1 // pred_check
      _
    $region43: #{tpu_custom_call.1} parent=1 // pred_check_branch
      %646 = sbr.rel (0) target = $region45
    $region44: #{tpu_custom_call.1} parent=1 // pred_region
      %647 = dma.done [#allocation4], 64
    $region45: #{tpu_custom_call.1} parent=1 // pred_fallthru
      _
    %648 = vsyncpa [#allocation3], 1
    %649 = vsyncpa [#allocation6], 1
    %650 = vsyncpa [#allocation9], 1
    %651 = vsyncpa [#allocation4], 1

</llo_original>
